<compile_context>
chip_gen: v7x
topology: tpu7x:2x2x1
jax: 0.10.0
libtpu: 0.0.40
codegen_flags: <defaults>
</compile_context>

<pallas_src>
import functools
import math

import jax
import jax.numpy as jnp
from jax import lax
from jax.experimental import pallas as pl
from jax.experimental.pallas import tpu as pltpu


_SQRT_HALF = 1.0 / math.sqrt(2.0)


def _stats_kernel(x_ref, w1_ref, b1_ref, ps_ref):
    """Pass 1: fc1 on one (batch, N-tile) block; emit per-tile sum / sumsq."""
    x = x_ref[0]                                            # (C, tile_n), native dtype -> MXU
    # fc1 for this spatial tile: contract C -> (tile_n, hidden), f32 accumulate.
    h = lax.dot_general(x, w1_ref[...], (((0,), (1,)), ((), ())),
                        preferred_element_type=jnp.float32)
    h = h + b1_ref[...].astype(jnp.float32)                 # (tile_n, hidden)

    # Spatial reductions offloaded to the (otherwise idle) MXU via a ones-row
    # dot instead of XLU jnp.sum: keeps the VPU slot free for the square.
    ones_row = jnp.ones((1, h.shape[0]), jnp.float32)       # (1, tile_n)
    s1 = lax.dot_general(ones_row, h, (((1,), (0,)), ((), ())),
                         preferred_element_type=jnp.float32)        # (1, hidden)
    s2 = lax.dot_general(ones_row, h * h, (((1,), (0,)), ((), ())),
                         preferred_element_type=jnp.float32)        # (1, hidden)
    ps_ref[0] = jnp.concatenate([s1, s2], axis=0)           # (2, hidden)


def _main_kernel(x_ref, w1_ref, b1_ref, w2_ref, b2_ref, st_ref, o_ref, *,
                 approx_gelu):
    """Pass 2: fc1 -> InstanceNorm (precomputed stats) -> GELU -> fc2."""
    x = x_ref[0]                                            # (C, tile_n)
    h = lax.dot_general(x, w1_ref[...], (((0,), (1,)), ((), ())),
                        preferred_element_type=jnp.float32)          # (tile_n, hidden)
    h = h + b1_ref[...].astype(jnp.float32)

    st = st_ref[0]                                          # (2, hidden) f32
    mean = st[0:1, :]                                       # (1, hidden)
    rstd = st[1:2, :]                                       # (1, hidden), eps folded in
    h = (h - mean) * rstd                                   # InstanceNorm2d (no affine)

    if approx_gelu:
        h = jax.nn.gelu(h, approximate=True)                # tanh form -> EUP slot
    else:
        h = 0.5 * h * (1.0 + lax.erf(h * _SQRT_HALF))       # exact nn.GELU

    # fc2: contract the FULL hidden dim (good MXU K) -> (tile_n, out),
    # out on the lane axis so the output is stored directly as (B, N, out).
    out = lax.dot_general(h.astype(w2_ref.dtype), w2_ref[...],
                          (((1,), (1,)), ((), ())),
                          preferred_element_type=jnp.float32)
    o_ref[0] = (out + b2_ref[...].astype(jnp.float32)).astype(o_ref.dtype)


def _vmem_budget_bytes(headroom_bytes=12 * 2**20):
    """Per-core VMEM capacity minus headroom for Mosaic-internal scratch."""
    cap = 64 * 2**20  # conservative default (v7x per-TC VMEM)
    try:
        info = pltpu.get_tpu_info()
        cap_attr = getattr(info, "vmem_capacity_bytes", None)
        if cap_attr:
            cap = int(cap_attr)
    except Exception:
        pass
    return max(16 * 2**20, cap - headroom_bytes)


def _pick_n_tile(N, hidden, C, out_f, itemsize, target_bytes):
    """Largest multiple of 128 dividing N whose per-step working set stays
    under target_bytes; falls back to a single full-N block (always legal)."""
    # Rough bytes per spatial column: a few f32 (tile_n, hidden) temporaries
    # plus the double-buffered x / output blocks.
    per_col = 6 * 4 * hidden + 2 * itemsize * (C + out_f)
    cap = max(128, target_bytes // max(per_col, 1))
    best = None
    t = 128
    while t <= min(N, cap):
        if N % t == 0:
            best = t
        t += 128
    if best is not None:
        return best
    # TODO(synk): ragged / non-128-divisible N needs masked partial tiles; the
    # full-N fallback is correct but its VMEM use scales with image size again.
    return N


def mlp_pallas(x_nchw, w1, b1, w2, b2, *, eps=1e-5, n_tile=None,
               mxu_dtype=None, approx_gelu=False):
    """x_nchw: (B, C, H, W). w1: (hidden, C), b1: (hidden,), w2: (out, hidden),
    b2: (out,).  Returns (B, H*W, out) -- same as the PyTorch module."""
    B, C, H, W = x_nchw.shape
    N = H * W
    hidden, c_in = w1.shape
    assert c_in == C, (w1.shape, C)
    out_f = w2.shape[0]
    assert w2.shape[1] == hidden, (w2.shape, hidden)

    in_dtype = x_nchw.dtype
    # NCHW -> (B, C, N): a pure reshape, no transpose / extra HBM pass.
    x_bcn = x_nchw.reshape(B, C, N)
    b1_row = b1.reshape(1, hidden)
    b2_row = b2.reshape(1, out_f)

    if mxu_dtype is not None:   # optional: full-rate MXU + half the x/w DMA bytes
        x_bcn = x_bcn.astype(mxu_dtype)
        w1 = w1.astype(mxu_dtype)
        w2 = w2.astype(mxu_dtype)

    budget = _vmem_budget_bytes()
    itemsize = x_bcn.dtype.itemsize
    w_itemsize = w1.dtype.itemsize
    f32 = 4

    if n_tile is None:
        n_tile = _pick_n_tile(N, hidden, C, out_f, itemsize,
                              target_bytes=min(budget // 3, 24 * 2**20))
    assert N % n_tile == 0, (N, n_tile)
    assert n_tile == N or n_tile % 128 == 0, n_tile
    n_n_tiles = N // n_tile

    # ---------------- pass 1: per-tile fc1 statistics ----------------
    stats_vmem = (2 * C * n_tile * itemsize          # x block (double buffered)
                  + 2 * hidden * C * w_itemsize      # w1
                  + 2 * hidden * f32                 # b1
                  + 2 * 2 * hidden * f32             # partial-sum block
                  + 3 * n_tile * hidden * f32)       # f32 temporaries (h, h*h)
    partials = pl.pallas_call(
        _stats_kernel,
        out_shape=jax.ShapeDtypeStruct((B * n_n_tiles, 2, hidden), jnp.float32),
        grid_spec=pltpu.PrefetchScalarGridSpec(
            num_scalar_prefetch=0,
            grid=(B, n_n_tiles),
            in_specs=[
                pl.BlockSpec((1, C, n_tile), lambda b, n: (b, 0, n)),
                pl.BlockSpec((hidden, C), lambda b, n: (0, 0)),
                pl.BlockSpec((1, hidden), lambda b, n: (0, 0)),
            ],
            out_specs=pl.BlockSpec((1, 2, hidden),
                                   lambda b, n: (b * n_n_tiles + n, 0, 0)),
        ),
        compiler_params=pltpu.CompilerParams(
            dimension_semantics=("parallel", "parallel"),
            vmem_limit_bytes=int(min(budget, max(32 * 2**20, 2 * stats_vmem)))),
    )(x_bcn, w1, b1_row)

    # Tiny JAX combine (n_n_tiles * hidden elements per batch): mean / rstd.
    totals = partials.reshape(B, n_n_tiles, 2, hidden).sum(axis=1)   # (B, 2, hidden)
    mean = totals[:, 0, :] / N
    var = jnp.maximum(totals[:, 1, :] / N - mean * mean, 0.0)        # biased var
    rstd = lax.rsqrt(var + eps)
    stats = jnp.stack([mean, rstd], axis=1).astype(jnp.float32)      # (B, 2, hidden)

    # ---------------- pass 2: normalize + GELU + fc2 ----------------
    main_vmem = (2 * C * n_tile * itemsize
                 + 2 * hidden * C * w_itemsize
                 + 2 * hidden * f32
                 + 2 * out_f * hidden * w_itemsize
                 + 2 * out_f * f32
                 + 2 * 2 * hidden * f32
                 + 2 * n_tile * out_f * itemsize     # output block (double buffered)
                 + 4 * n_tile * hidden * f32)        # f32 temporaries
    kernel = functools.partial(_main_kernel, approx_gelu=approx_gelu)
    out = pl.pallas_call(
        kernel,
        out_shape=jax.ShapeDtypeStruct((B, N, out_f), in_dtype),
        grid_spec=pltpu.PrefetchScalarGridSpec(
            num_scalar_prefetch=0,
            grid=(B, n_n_tiles),
            in_specs=[
                pl.BlockSpec((1, C, n_tile), lambda b, n: (b, 0, n)),
                pl.BlockSpec((hidden, C), lambda b, n: (0, 0)),
                pl.BlockSpec((1, hidden), lambda b, n: (0, 0)),
                pl.BlockSpec((out_f, hidden), lambda b, n: (0, 0)),
                pl.BlockSpec((1, out_f), lambda b, n: (0, 0)),
                pl.BlockSpec((1, 2, hidden), lambda b, n: (b, 0, 0)),
            ],
            out_specs=pl.BlockSpec((1, n_tile, out_f), lambda b, n: (b, n, 0)),
        ),
        compiler_params=pltpu.CompilerParams(
            dimension_semantics=("parallel", "parallel"),
            vmem_limit_bytes=int(min(budget, max(32 * 2**20, 2 * main_vmem)))),
    )(x_bcn, w1, b1_row, w2, b2_row, stats)
    return out


def mlp_reference(x_nchw, w1, b1, w2, b2, *, eps=1e-5):
    """Pure-JAX reference mirroring the PyTorch forward exactly."""
    B, C, H, W = x_nchw.shape
    N = H * W
    x = jnp.transpose(x_nchw.reshape(B, C, N), (0, 2, 1))            # (B, N, C)
    h = jnp.einsum("bnc,hc->bnh", x, w1) + b1                        # (B, N, hidden)
    mean = jnp.mean(h, axis=1, keepdims=True)
    var = jnp.mean((h - mean) ** 2, axis=1, keepdims=True)
    h = (h - mean) / jnp.sqrt(var + eps)
    h = 0.5 * h * (1.0 + lax.erf(h / jnp.sqrt(2.0)))
    out = jnp.einsum("bnh,oh->bno", h, w2) + b2                      # (B, N, out)
    return out


if __name__ == "__main__":
    key = jax.random.PRNGKey(0)
    B, C, H, W = 2, 4, 16, 16
    hidden = 32
    out_features = C  # out_features defaults to in_features

    k_x, k_w1, k_b1, k_w2, k_b2 = jax.random.split(key, 5)

    x = jax.random.normal(k_x, (B, C, H, W), dtype=jnp.float32)

    # Deterministic synthetic parameters (nn.Linear shape conventions).
    lim1 = 1.0 / math.sqrt(C)
    w1 = jax.random.uniform(k_w1, (hidden, C), minval=-lim1, maxval=lim1, dtype=jnp.float32)
    b1 = jax.random.uniform(k_b1, (hidden,), minval=-lim1, maxval=lim1, dtype=jnp.float32)
    lim2 = 1.0 / math.sqrt(hidden)
    w2 = jax.random.uniform(k_w2, (out_features, hidden), minval=-lim2, maxval=lim2, dtype=jnp.float32)
    b2 = jax.random.uniform(k_b2, (out_features,), minval=-lim2, maxval=lim2, dtype=jnp.float32)

    y_ref = mlp_reference(x, w1, b1, w2, b2)

    # Default (auto N-tile) path.
    y = jax.block_until_ready(mlp_pallas(x, w1, b1, w2, b2))
    assert y.shape == (B, H * W, out_features), y.shape
    assert jnp.allclose(y, y_ref, rtol=1e-4, atol=1e-4), \
        float(jnp.max(jnp.abs(y - y_ref)))

    # Forced multi-N-tile path (exercises the two-pass partial-stats combine).
    y_tiled = jax.block_until_ready(mlp_pallas(x, w1, b1, w2, b2, n_tile=128))
    assert jnp.allclose(y_tiled, y_ref, rtol=1e-4, atol=1e-4), \
        float(jnp.max(jnp.abs(y_tiled - y_ref)))

    # Fast path: bf16 MXU operands + tanh GELU (loose tolerance by design).
    y_fast = jax.block_until_ready(
        mlp_pallas(x, w1, b1, w2, b2, mxu_dtype=jnp.bfloat16, approx_gelu=True))
    assert y_fast.shape == (B, H * W, out_features), y_fast.shape
    assert jnp.allclose(y_fast, y_ref, rtol=1e-1, atol=1e-1), \
        float(jnp.max(jnp.abs(y_fast - y_ref)))

    print("KERNEL_OK")
</pallas_src>

<mosaic_0001>
module attributes {stable_mosaic.version = 11 : i64} {
  func.func @_stats_kernel(%arg0: i32, %arg1: i32, %arg2: memref<1x4x256xf32, #tpu.memory_space<vmem>>, %arg3: memref<32x4xf32, #tpu.memory_space<vmem>>, %arg4: memref<1x32xf32, #tpu.memory_space<vmem>>, %arg5: memref<1x2x32xf32, #tpu.memory_space<vmem>>) attributes {dimension_semantics = [#tpu.dimension_semantics<parallel>, #tpu.dimension_semantics<parallel>], iteration_bounds = array<i64: 2, 1>, scalar_prefetch = 0 : i64, scratch_operands = 0 : i64, tpu.core_type = #tpu.core_type<tc>, window_params = [{transform_indices = @transform_0, window_bounds = array<i64: 1, 4, 256>}, {pipeline_mode = #tpu.pipeline_mode<synchronous>, transform_indices = @transform_1, window_bounds = array<i64: 32, 4>}, {pipeline_mode = #tpu.pipeline_mode<synchronous>, transform_indices = @transform_2, window_bounds = array<i64: 1, 32>}, {transform_indices = @transform_3, window_bounds = array<i64: 1, 2, 32>}]} {
    %c0 = arith.constant 0 : index
    %c0_0 = arith.constant 0 : index
    %c0_1 = arith.constant 0 : index
    %0 = vector.load %arg2[%c0, %c0_0, %c0_1] : memref<1x4x256xf32, #tpu.memory_space<vmem>>, vector<1x4x256xf32>
    %1 = vector.shape_cast %0 : vector<1x4x256xf32> to vector<4x256xf32>
    %c0_2 = arith.constant 0 : index
    %c0_3 = arith.constant 0 : index
    %2 = vector.load %arg3[%c0_2, %c0_3] : memref<32x4xf32, #tpu.memory_space<vmem>>, vector<32x4xf32>
    %cst = arith.constant dense<0.000000e+00> : vector<256x32xf32>
    %3 = tpu.matmul %1, %2, %cst {dimension_numbers = #tpu.dot_dimension_numbers<[0], [1], [1], [0], [0, 1, 1, 0], [], []>} : vector<4x256xf32>, vector<32x4xf32>, vector<256x32xf32> -> vector<256x32xf32>
    %c0_4 = arith.constant 0 : index
    %c0_5 = arith.constant 0 : index
    %4 = vector.load %arg4[%c0_4, %c0_5] : memref<1x32xf32, #tpu.memory_space<vmem>>, vector<1x32xf32>
    %5 = vector.broadcast %4 : vector<1x32xf32> to vector<256x32xf32>
    %6 = arith.addf %3, %5 : vector<256x32xf32>
    %cst_6 = arith.constant 1.000000e+00 : f32
    %7 = vector.broadcast %cst_6 : f32 to vector<1x256xf32>
    %cst_7 = arith.constant dense<0.000000e+00> : vector<1x32xf32>
    %8 = tpu.matmul %7, %6, %cst_7 {dimension_numbers = #tpu.dot_dimension_numbers<[1], [0], [0], [1], [0, 0, 1, 1], [], []>} : vector<1x256xf32>, vector<256x32xf32>, vector<1x32xf32> -> vector<1x32xf32>
    %9 = arith.mulf %6, %6 : vector<256x32xf32>
    %cst_8 = arith.constant dense<0.000000e+00> : vector<1x32xf32>
    %10 = tpu.matmul %7, %9, %cst_8 {dimension_numbers = #tpu.dot_dimension_numbers<[1], [0], [0], [1], [0, 0, 1, 1], [], []>} : vector<1x256xf32>, vector<256x32xf32>, vector<1x32xf32> -> vector<1x32xf32>
    %11 = tpu.concatenate %8, %10 in 0 : vector<1x32xf32>, vector<1x32xf32> -> vector<2x32xf32>
    %c0_9 = arith.constant 0 : index
    %c0_10 = arith.constant 0 : index
    %c0_11 = arith.constant 0 : index
    %12 = vector.load %arg5[%c0_9, %c0_10, %c0_11] : memref<1x2x32xf32, #tpu.memory_space<vmem>>, vector<1x2x32xf32>
    %13 = vector.shape_cast %12 : vector<1x2x32xf32> to vector<2x32xf32>
    %14 = vector.shape_cast %11 : vector<2x32xf32> to vector<1x2x32xf32>
    tpu.vector_store %arg5[%c0_9, %c0_10, %c0_11], %14 {strides = array<i32>} : memref<1x2x32xf32, #tpu.memory_space<vmem>>, vector<1x2x32xf32>,
    return
  }
  func.func @transform_0(%arg0: i32, %arg1: i32) -> (i32, i32, i32) {
    %c0_i32 = arith.constant 0 : i32
    %c0_i32_0 = arith.constant 0 : i32
    return %arg0, %c0_i32, %arg1 : i32, i32, i32
  }
  func.func @transform_1(%arg0: i32, %arg1: i32) -> (i32, i32) {
    %c0_i32 = arith.constant 0 : i32
    %c0_i32_0 = arith.constant 0 : i32
    %c0_i32_1 = arith.constant 0 : i32
    return %c0_i32, %c0_i32_0 : i32, i32
  }
  func.func @transform_2(%arg0: i32, %arg1: i32) -> (i32, i32) {
    %c0_i32 = arith.constant 0 : i32
    %c0_i32_0 = arith.constant 0 : i32
    %c0_i32_1 = arith.constant 0 : i32
    return %c0_i32, %c0_i32_0 : i32, i32
  }
  func.func @transform_3(%arg0: i32, %arg1: i32) -> (i32, i32, i32) {
    %c1_i32 = arith.constant 1 : i32
    %0 = arith.muli %arg0, %c1_i32 : i32
    %1 = arith.addi %0, %arg1 : i32
    %c0_i32 = arith.constant 0 : i32
    %c0_i32_0 = arith.constant 0 : i32
    %c0_i32_1 = arith.constant 0 : i32
    return %1, %c0_i32, %c0_i32_0 : i32, i32, i32
  }
}

</mosaic_0001>

<llo_original>
// kernel: tpu_custom_call.1
$region0: #{tpu_custom_call.1}
  #allocation0 [shape = 'u32[]', space=smem, size = 0x4, offset = 0x4, fixed_abs, tag = 'smem constant byte address 0x4 - core index']
  #allocation1 [shape = 'u32[144,128]{1,0:T(1,128)}', space=vmem, size = 0x12000, scoped, tag = 'internal scratch']
  %s0 = inlined_call_operand.vmem [shape: f32[2,4,256], index: 0, kind: input, shape index: {}]
  %s1 = inlined_call_operand.vmem [shape: f32[32,4], index: 1, kind: input, shape index: {}]
  %s2 = inlined_call_operand.vmem [shape: f32[1,32], index: 2, kind: input, shape index: {}]
  %s3 = inlined_call_operand.hbm [shape: f32[2,2,32], index: 3, kind: output, shape index: {}]
  %s4 = sld [smem:[#allocation0]]
  $region45: #{tpu_custom_call.1} parent=0
    _
  %s6 = ssub.s32 1, %s4
  %s7 = scalar_select 0, %s6, %s4
  $region1: #{tpu_custom_call.1} parent=0
    #allocation2 [shape = 'u8[2048]{0}', space=vmem, size = 0x800, scoped, tag = 'output window, operand 0']
    #allocation3 [shape = 's32[2]{0}', space=sflag, size = 0x8, scoped, tag = 'scoped memory for tpu_custom_call.1']
    %8 = vsyncpa [#allocation3], 0
    %s9 = scalar_lea.sflag [#allocation3], 1
    %10 = vsyncpa %s9, 0
    loop: start=0, step=1, limit=4
    $region2: #{tpu_custom_call.1} parent=1 // loop_pre_header
      _
    $region3: #{tpu_custom_call.1} parent=1 // loop_header
      %s12 = sphi 0, %s16
      %p13 = scmp.ge.s32.totalorder %s12, 4
      %s19 = sphi 0, %s31
      %s20 = sphi 0, %s27
      %s21 = sphi 0, %s19
      %s22 = sphi 0, %s20
      %s23 = sphi 0, %s21
      %s24 = sphi 0, %s22
      %s36 = sphi 0, %s38
      %s39 = sphi 0, %s36
      %s40 = sphi 0, %s39
      %s56 = sphi 0, %s40
      %s60 = sphi 0, %s60
      %s62 = sphi 0, %s60
      %s63 = sphi 0, %s62
      %s77 = sphi 0, %s63
      %s81 = sphi 0, %s81
      %s83 = sphi 0, %s81
      %s84 = sphi 0, %s83
      %s98 = sphi 0, %s84
      %s106 = sphi 0, %s108
      %s109 = sphi 0, %s106
      %s110 = sphi 0, %s109
      %s126 = sphi 0, %s110
    $region4: #{tpu_custom_call.1} parent=1 // loop_header_branch
      %15 = sbr.rel (%p13) target = $region8
    $region5: #{tpu_custom_call.1} parent=1 // loop_body
      %s17 = ssub.s32 %s12, 1
      %s18 = ssub.s32 %s12, 2
      %s25 = sadd.s32 1, %s20
      %p26 = scmp.ge.s32.totalorder %s25, 1
      %s27 = scalar_select %p26, 0, %s25
      %s28 = sadd.s32 1, %s19
      %s29 = scalar_select %p26, %s28, %s19
      %p30 = scmp.ge.s32.totalorder %s29, 2
      %s31 = scalar_select %p30, 0, %s29
      %s32 = ssub.s32 %s19, %s31
      %s33 = ssub.s32 %s20, %s27
      %s34 = sor.u32 %s32, %s33
      %p35 = scmp.eq.s32.totalorder %s34, 0
      %s37 = sadd.s32 %s36, 1
      %s38 = scalar_select %p35, %s36, %s37
      %p41 = pneg %p35
      %p42 = scmp.eq.s32.totalorder %s12, 1
      %p43 = por %p41, %p42
      %p44 = scmp.ne.s32.totalorder %s36, %s39
      %p45 = scmp.eq.s32.totalorder %s12, 0
      %p46 = por %p44, %p45
      %p47 = scmp.ne.s32.totalorder %s36, %s39
      %p48 = scmp.eq.s32.totalorder %s17, 1
      %p49 = por %p47, %p48
      %p50 = scmp.ne.s32.totalorder %s39, %s40
      %p51 = scmp.eq.s32.totalorder %s17, 0
      %p52 = por %p50, %p51
      %p53 = scmp.ne.s32.totalorder %s39, %s40
      %p54 = scmp.eq.s32.totalorder %s18, 1
      %p55 = por %p53, %p54
      %p57 = scmp.ne.s32.totalorder %s40, %s56
      %p58 = scmp.eq.s32.totalorder %s18, 0
      %p59 = por %p57, %p58
      %s61 = sadd.s32 %s60, 1
      %p64 = scmp.eq.s32.totalorder %s12, 1
      %p65 = scmp.ne.s32.totalorder %s60, %s62
      %p66 = scmp.eq.s32.totalorder %s12, 0
      %p67 = por %p65, %p66
      %p68 = scmp.ne.s32.totalorder %s60, %s62
      %p69 = scmp.eq.s32.totalorder %s17, 1
      %p70 = por %p68, %p69
      %p71 = scmp.ne.s32.totalorder %s62, %s63
      %p72 = scmp.eq.s32.totalorder %s17, 0
      %p73 = por %p71, %p72
      %p74 = scmp.ne.s32.totalorder %s62, %s63
      %p75 = scmp.eq.s32.totalorder %s18, 1
      %p76 = por %p74, %p75
      %p78 = scmp.ne.s32.totalorder %s63, %s77
      %p79 = scmp.eq.s32.totalorder %s18, 0
      %p80 = por %p78, %p79
      %s82 = sadd.s32 %s81, 1
      %p85 = scmp.eq.s32.totalorder %s12, 1
      %p86 = scmp.ne.s32.totalorder %s81, %s83
      %p87 = scmp.eq.s32.totalorder %s12, 0
      %p88 = por %p86, %p87
      %p89 = scmp.ne.s32.totalorder %s81, %s83
      %p90 = scmp.eq.s32.totalorder %s17, 1
      %p91 = por %p89, %p90
      %p92 = scmp.ne.s32.totalorder %s83, %s84
      %p93 = scmp.eq.s32.totalorder %s17, 0
      %p94 = por %p92, %p93
      %p95 = scmp.ne.s32.totalorder %s83, %s84
      %p96 = scmp.eq.s32.totalorder %s18, 1
      %p97 = por %p95, %p96
      %p99 = scmp.ne.s32.totalorder %s84, %s98
      %p100 = scmp.eq.s32.totalorder %s18, 0
      %p101 = por %p99, %p100
      %s102 = sadd.s32 %s19, %s20
      %s103 = sadd.s32 %s31, %s27
      %s104 = ssub.s32 %s102, %s103
      %p105 = scmp.eq.s32.totalorder %s104, 0
      %s107 = sadd.s32 %s106, 1
      %s108 = scalar_select %p105, %s106, %s107
      %p111 = pneg %p105
      %p112 = scmp.eq.s32.totalorder %s12, 1
      %p113 = por %p111, %p112
      %p114 = scmp.ne.s32.totalorder %s106, %s109
      %p115 = scmp.eq.s32.totalorder %s12, 0
      %p116 = por %p114, %p115
      %p117 = scmp.ne.s32.totalorder %s106, %s109
      %p118 = scmp.eq.s32.totalorder %s17, 1
      %p119 = por %p117, %p118
      %p120 = scmp.ne.s32.totalorder %s109, %s110
      %p121 = scmp.eq.s32.totalorder %s17, 0
      %p122 = por %p120, %p121
      %p123 = scmp.ne.s32.totalorder %s109, %s110
      %p124 = scmp.eq.s32.totalorder %s18, 1
      %p125 = por %p123, %p124
      %p127 = scmp.ne.s32.totalorder %s110, %s126
      %p128 = scmp.eq.s32.totalorder %s18, 0
      %p129 = por %p127, %p128
      %p130 = scmp.le.s32.totalorder 1, %s12
      %p131 = scmp.lt.s32.totalorder %s12, 3
      %p132 = pnand %p130, %p131
      %p133 = pneg %p132
      // Predicated region
      $region9: #{tpu_custom_call.1} parent=5 // pred_check
        _
      $region10: #{tpu_custom_call.1} parent=5 // pred_check_branch
        %135 = sbr.rel (%p132) target = $region12
      $region11: #{tpu_custom_call.1} parent=5 // pred_region
        %s136 = ssub.s32 %s12, 1
        // Predicated region
        $region13: #{tpu_custom_call.1} parent=11 // pred_check
          %p137 = pneg %p73
        $region14: #{tpu_custom_call.1} parent=11 // pred_check_branch
          %139 = sbr.rel (%p137) target = $region16
        $region15: #{tpu_custom_call.1} parent=11 // pred_region
          _
        $region16: #{tpu_custom_call.1} parent=11 // pred_fallthru
          _
        // Predicated region
        $region17: #{tpu_custom_call.1} parent=11 // pred_check
          %p140 = pneg %p94
        $region18: #{tpu_custom_call.1} parent=11 // pred_check_branch
          %142 = sbr.rel (%p140) target = $region20
        $region19: #{tpu_custom_call.1} parent=11 // pred_region
          _
        $region20: #{tpu_custom_call.1} parent=11 // pred_fallthru
          _
      $region12: #{tpu_custom_call.1} parent=5 // pred_fallthru
        _
      %p143 = scmp.lt.s32.totalorder %s12, 2
      // Predicated region
      $region21: #{tpu_custom_call.1} parent=5 // pred_check
        %p144 = pneg %p143
      $region22: #{tpu_custom_call.1} parent=5 // pred_check_branch
        %146 = sbr.rel (%p144) target = $region24
      $region23: #{tpu_custom_call.1} parent=5 // pred_region
        // Predicated region
        $region25: #{tpu_custom_call.1} parent=23 // pred_check
          %p147 = pneg %p46
        $region26: #{tpu_custom_call.1} parent=23 // pred_check_branch
          %149 = sbr.rel (%p147) target = $region28
        $region27: #{tpu_custom_call.1} parent=23 // pred_region
          %s150 = smul.u32 2, %s20
          %p151 = scmp.lt.s32.totalorder %s19, 1
          %s152 = scalar_select %p151, %s19, 1
          %p153 = scmp.lt.s32.totalorder %s150, 1
          %s154 = scalar_select %p153, %s150, 1
          %s155 = smul.addr %s152, 2
          %s156 = sadd.s32 %s154, %s155
          %s157 = smul.addr %s156, 4
          %s158 = scalar_lea.vmem %s0, %s157
          %s159 = smul.u32 2, %s20
        $region28: #{tpu_custom_call.1} parent=23 // pred_fallthru
          _
      $region24: #{tpu_custom_call.1} parent=5 // pred_fallthru
        _
      %p160 = scmp.le.s32.totalorder 1, %s12
      %p161 = scmp.lt.s32.totalorder %s12, 3
      %p162 = pnand %p160, %p161
      %p163 = pneg %p162
      // Predicated region
      $region29: #{tpu_custom_call.1} parent=5 // pred_check
        _
      $region30: #{tpu_custom_call.1} parent=5 // pred_check_branch
        %165 = sbr.rel (%p162) target = $region32
      $region31: #{tpu_custom_call.1} parent=5 // pred_region
        %s166 = ssub.s32 %s12, 1
        %s167 = smul.u32 2, %s22
        %p168 = scmp.lt.s32.totalorder %s21, 1
        %s169 = scalar_select %p168, %s21, 1
        %p170 = scmp.lt.s32.totalorder %s167, 1
        %s171 = scalar_select %p170, %s167, 1
        %s172 = smul.addr %s169, 2
        %s173 = sadd.s32 %s171, %s172
        %s174 = smul.addr %s173, 4
        %s175 = scalar_lea.vmem %s0, %s174
        %p176 = pneg %p52
        %p177 = pneg %p49
        %p178 = pneg %p73
        %p179 = pneg %p70
        %p180 = pneg %p94
        %p181 = pneg %p91
        %p182 = pneg %p122
        %p183 = pneg %p119
        %s184 = sand.u32 %s109, 1
        %s185 = scalar_lea.sflag [#allocation3], %s184
        %s186 = sand.u32 %s109, 1
        %s187 = smul.addr %s186, 2
        %s188 = scalar_lea.vmem [#allocation2], %s187
        %s189 = smul.u32 2, %s22
        %p190 = scmp.lt.s32.totalorder %s21, 1
        %s191 = scalar_select %p190, %s21, 1
        %p192 = scmp.lt.s32.totalorder %s189, 1
        %s193 = scalar_select %p192, %s189, 1
        %s194 = smul.addr %s191, 2
        %s195 = sadd.s32 %s193, %s194
        %s196 = smul.addr %s195, 4
        %s197 = scalar_lea.vmem %s0, %s196
        %s198 = smul.u32 2, %s22
        %s199 = sadd.s32 %s21, %s22
        %v200 = vld [vmem:[%s197] sm:$0xff]
        %v201 = vld [vmem:[%s1] sm:$0xff]
        %v202 = vld [vmem:[%s1 + $0x8] sm:$0xff]
        %v203 = vld [vmem:[%s1 + $0x10] sm:$0xff]
        %v204 = vld [vmem:[%s1 + $0x18] sm:$0xff]
        %v205 = vld [vmem:[%s2] sm:$0x1]
        %v207 = vlaneseq
        %v208 = vshrl.u32 %v207, 7
        %v209 = vsub.s32 0, %v208
        %v210 = vrot.slane %v205, %v209
        %v213 = vcombine.high %v200, %v200
        %215 = vxpose.xlu0.b32.start [1/16] %v200, 128
        %216 = vxpose.xlu0.b32.cont [2/16] 0.0, 128
        %217 = vxpose.xlu0.b32.cont [3/16] 0.0, 128
        %218 = vxpose.xlu0.b32.cont [4/16] 0.0, 128
        %219 = vxpose.xlu0.b32.cont [5/16] 0.0, 128
        %220 = vxpose.xlu0.b32.cont [6/16] 0.0, 128
        %221 = vxpose.xlu0.b32.cont [7/16] 0.0, 128
        %222 = vxpose.xlu0.b32.cont [8/16] 0.0, 128
        %223 = vxpose.xlu0.b32.cont [9/16] 0.0, 128
        %224 = vxpose.xlu0.b32.cont [10/16] 0.0, 128
        %225 = vxpose.xlu0.b32.cont [11/16] 0.0, 128
        %226 = vxpose.xlu0.b32.cont [12/16] 0.0, 128
        %227 = vxpose.xlu0.b32.cont [13/16] 0.0, 128
        %228 = vxpose.xlu0.b32.cont [14/16] 0.0, 128
        %229 = vxpose.xlu0.b32.cont [15/16] 0.0, 128
        %230 = vxpose.xlu0.b32.end [16/16] 0.0, 128
        %v231 = vpop.trf.xlu0
        %v232 = vpop.trf.xlu0
        %v233 = vpop.trf.xlu0
        %v234 = vpop.trf.xlu0
        %v235 = vpop.trf.xlu0
        %v236 = vpop.trf.xlu0
        %v237 = vpop.trf.xlu0
        %v238 = vpop.trf.xlu0
        %v239 = vpop.trf.xlu0
        %v240 = vpop.trf.xlu0
        %v241 = vpop.trf.xlu0
        %v242 = vpop.trf.xlu0
        %v243 = vpop.trf.xlu0
        %v244 = vpop.trf.xlu0
        %v245 = vpop.trf.xlu0
        %v246 = vpop.trf.xlu0
        %247 = vxpose.xlu0.b32.start [1/16] %v213, 128
        %248 = vxpose.xlu0.b32.cont [2/16] 0.0, 128
        %249 = vxpose.xlu0.b32.cont [3/16] 0.0, 128
        %250 = vxpose.xlu0.b32.cont [4/16] 0.0, 128
        %251 = vxpose.xlu0.b32.cont [5/16] 0.0, 128
        %252 = vxpose.xlu0.b32.cont [6/16] 0.0, 128
        %253 = vxpose.xlu0.b32.cont [7/16] 0.0, 128
        %254 = vxpose.xlu0.b32.cont [8/16] 0.0, 128
        %255 = vxpose.xlu0.b32.cont [9/16] 0.0, 128
        %256 = vxpose.xlu0.b32.cont [10/16] 0.0, 128
        %257 = vxpose.xlu0.b32.cont [11/16] 0.0, 128
        %258 = vxpose.xlu0.b32.cont [12/16] 0.0, 128
        %259 = vxpose.xlu0.b32.cont [13/16] 0.0, 128
        %260 = vxpose.xlu0.b32.cont [14/16] 0.0, 128
        %261 = vxpose.xlu0.b32.cont [15/16] 0.0, 128
        %262 = vxpose.xlu0.b32.end [16/16] 0.0, 128
        %v263 = vpop.trf.xlu0
        %v264 = vpop.trf.xlu0
        %v265 = vpop.trf.xlu0
        %v266 = vpop.trf.xlu0
        %v267 = vpop.trf.xlu0
        %v268 = vpop.trf.xlu0
        %v269 = vpop.trf.xlu0
        %v270 = vpop.trf.xlu0
        %v271 = vpop.trf.xlu0
        %v272 = vpop.trf.xlu0
        %v273 = vpop.trf.xlu0
        %v274 = vpop.trf.xlu0
        %v275 = vpop.trf.xlu0
        %v276 = vpop.trf.xlu0
        %v277 = vpop.trf.xlu0
        %v278 = vpop.trf.xlu0
        %vm279 = vcmask 31744
        %v281 = vsel %vm279, %v231, 0
        %v284 = vsel %vm279, %v232, 0
        %v287 = vsel %vm279, %v233, 0
        %v290 = vsel %vm279, %v234, 0
        %v293 = vsel %vm279, %v235, 0
        %v296 = vsel %vm279, %v236, 0
        %v299 = vsel %vm279, %v237, 0
        %v302 = vsel %vm279, %v238, 0
        %v305 = vsel %vm279, %v239, 0
        %v308 = vsel %vm279, %v240, 0
        %v311 = vsel %vm279, %v241, 0
        %v314 = vsel %vm279, %v242, 0
        %v317 = vsel %vm279, %v243, 0
        %v320 = vsel %vm279, %v244, 0
        %v323 = vsel %vm279, %v245, 0
        %v326 = vsel %vm279, %v246, 0
        %v329 = vsel %vm279, %v263, 0
        %v332 = vsel %vm279, %v264, 0
        %v335 = vsel %vm279, %v265, 0
        %v338 = vsel %vm279, %v266, 0
        %v341 = vsel %vm279, %v267, 0
        %v344 = vsel %vm279, %v268, 0
        %v347 = vsel %vm279, %v269, 0
        %v350 = vsel %vm279, %v270, 0
        %v353 = vsel %vm279, %v271, 0
        %v356 = vsel %vm279, %v272, 0
        %v359 = vsel %vm279, %v273, 0
        %v362 = vsel %vm279, %v274, 0
        %v365 = vsel %vm279, %v275, 0
        %v368 = vsel %vm279, %v276, 0
        %v371 = vsel %vm279, %v277, 0
        %v374 = vsel %vm279, %v278, 0
        %v377 = vsel %vm279, %v201, 0
        %v380 = vsel %vm279, %v202, 0
        %v383 = vsel %vm279, %v203, 0
        %v386 = vsel %vm279, %v204, 0
        %388 = vmatprep.subr.mxu0 0.0
        %389 = vmatpush1.xpose.msra.mxu0 %v377
        %390 = vmatprep.subr.mxu0 0.0
        %391 = vmatpush1.xpose.msra.mxu0 %v380
        %392 = vmatprep.subr.mxu0 0.0
        %393 = vmatpush1.xpose.msra.mxu0 %v383
        %394 = vmatprep.subr.mxu0 0.0
        %395 = vmatpush1.xpose.msra.mxu0 %v386
        %396 = vmatprep.subr.mxu0 0.0
        %397 = vmatpush1.xpose.msra.mxu0 0.0
        %398 = vmatprep.subr.mxu0 0.0
        %399 = vmatpush1.xpose.msra.mxu0 0.0
        %400 = vmatprep.subr.mxu0 0.0
        %401 = vmatpush1.xpose.msra.mxu0 0.0
        %402 = vmatprep.subr.mxu0 0.0
        %403 = vmatpush1.xpose.msra.mxu0 0.0
        %404 = vmatprep.subr.mxu0 0.0
        %405 = vmatpush1.xpose.msra.mxu0 0.0
        %406 = vmatprep.subr.mxu0 0.0
        %407 = vmatpush1.xpose.msra.mxu0 0.0
        %408 = vmatprep.subr.mxu0 0.0
        %409 = vmatpush1.xpose.msra.mxu0 0.0
        %410 = vmatprep.subr.mxu0 0.0
        %411 = vmatpush1.xpose.msra.mxu0 0.0
        %412 = vmatprep.subr.mxu0 0.0
        %413 = vmatpush1.xpose.msra.mxu0 0.0
        %414 = vmatprep.subr.mxu0 0.0
        %415 = vmatpush1.xpose.msra.mxu0 0.0
        %416 = vmatprep.subr.mxu0 0.0
        %417 = vmatpush1.xpose.msra.mxu0 0.0
        %418 = vmatprep.subr.mxu0 0.0
        %419 = vmatpush1.xpose.msra.mxu0 0.0
        %420 = vmatprep.subr.mxu0 0.0
        %421 = vmatpush1.xpose.msra.mxu0 0.0
        %422 = vmatprep.subr.mxu0 0.0
        %423 = vmatpush1.xpose.msra.mxu0 0.0
        %424 = vmatprep.subr.mxu0 0.0
        %425 = vmatpush1.xpose.msra.mxu0 0.0
        %426 = vmatprep.subr.mxu0 0.0
        %427 = vmatpush1.xpose.msra.mxu0 0.0
        %428 = vmatprep.subr.mxu0 0.0
        %429 = vmatpush1.xpose.msra.mxu0 0.0
        %430 = vmatprep.subr.mxu0 0.0
        %431 = vmatpush1.xpose.msra.mxu0 0.0
        %432 = vmatprep.subr.mxu0 0.0
        %433 = vmatpush1.xpose.msra.mxu0 0.0
        %434 = vmatprep.subr.mxu0 0.0
        %435 = vmatpush1.xpose.msra.mxu0 0.0
        %436 = vmatprep.subr.mxu0 0.0
        %437 = vmatpush1.xpose.msra.mxu0 0.0
        %438 = vmatprep.subr.mxu0 0.0
        %439 = vmatpush1.xpose.msra.mxu0 0.0
        %440 = vmatprep.subr.mxu0 0.0
        %441 = vmatpush1.xpose.msra.mxu0 0.0
        %442 = vmatprep.subr.mxu0 0.0
        %443 = vmatpush1.xpose.msra.mxu0 0.0
        %444 = vmatprep.subr.mxu0 0.0
        %445 = vmatpush1.xpose.msra.mxu0 0.0
        %446 = vmatprep.subr.mxu0 0.0
        %447 = vmatpush1.xpose.msra.mxu0 0.0
        %448 = vmatprep.subr.mxu0 0.0
        %449 = vmatpush1.xpose.msra.mxu0 0.0
        %450 = vmatprep.subr.mxu0 0.0
        %451 = vmatpush1.xpose.msra.mxu0 0.0
        %452 = vmatprep.mubr.f32.mxu0 0.0
        %453 = vmatmul.mubr.f32.gmra.mrb[0].mxu0 %v281
        %v454 = vpop.f32.mrb[0].mxu0
        %v455 = vadd.f32 %v210, %v454
        %v456 = vpop.f32.mrb[0].mxu0
        %457 = vmatprep.mubr.f32.mxu0 0.0
        %458 = vmatmul.mubr.f32.gmra.mrb[0].mxu0 %v284
        %v459 = vpop.f32.mrb[0].mxu0
        %v460 = vadd.f32 %v210, %v459
        %v461 = vpop.f32.mrb[0].mxu0
        %462 = vmatprep.mubr.f32.mxu0 0.0
        %463 = vmatmul.mubr.f32.gmra.mrb[0].mxu0 %v287
        %v464 = vpop.f32.mrb[0].mxu0
        %v465 = vadd.f32 %v210, %v464
        %v466 = vpop.f32.mrb[0].mxu0
        %467 = vmatprep.mubr.f32.mxu0 0.0
        %468 = vmatmul.mubr.f32.gmra.mrb[0].mxu0 %v290
        %v469 = vpop.f32.mrb[0].mxu0
        %v470 = vadd.f32 %v210, %v469
        %v471 = vpop.f32.mrb[0].mxu0
        %472 = vmatprep.mubr.f32.mxu0 0.0
        %473 = vmatmul.mubr.f32.gmra.mrb[0].mxu0 %v293
        %v474 = vpop.f32.mrb[0].mxu0
        %v475 = vadd.f32 %v210, %v474
        %v476 = vpop.f32.mrb[0].mxu0
        %477 = vmatprep.mubr.f32.mxu0 0.0
        %478 = vmatmul.mubr.f32.gmra.mrb[0].mxu0 %v296
        %v479 = vpop.f32.mrb[0].mxu0
        %v480 = vadd.f32 %v210, %v479
        %v481 = vpop.f32.mrb[0].mxu0
        %482 = vmatprep.mubr.f32.mxu0 0.0
        %483 = vmatmul.mubr.f32.gmra.mrb[0].mxu0 %v299
        %v484 = vpop.f32.mrb[0].mxu0
        %v485 = vadd.f32 %v210, %v484
        %v486 = vpop.f32.mrb[0].mxu0
        %487 = vmatprep.mubr.f32.mxu0 0.0
        %488 = vmatmul.mubr.f32.gmra.mrb[0].mxu0 %v302
        %v489 = vpop.f32.mrb[0].mxu0
        %v490 = vadd.f32 %v210, %v489
        %v491 = vpop.f32.mrb[0].mxu0
        %492 = vmatprep.mubr.f32.mxu0 0.0
        %493 = vmatmul.mubr.f32.gmra.mrb[0].mxu0 %v305
        %v494 = vpop.f32.mrb[0].mxu0
        %v495 = vadd.f32 %v210, %v494
        %v496 = vpop.f32.mrb[0].mxu0
        %497 = vmatprep.mubr.f32.mxu0 0.0
        %498 = vmatmul.mubr.f32.gmra.mrb[0].mxu0 %v308
        %v499 = vpop.f32.mrb[0].mxu0
        %v500 = vadd.f32 %v210, %v499
        %v501 = vpop.f32.mrb[0].mxu0
        %502 = vmatprep.mubr.f32.mxu0 0.0
        %503 = vmatmul.mubr.f32.gmra.mrb[0].mxu0 %v311
        %v504 = vpop.f32.mrb[0].mxu0
        %v505 = vadd.f32 %v210, %v504
        %v506 = vpop.f32.mrb[0].mxu0
        %507 = vmatprep.mubr.f32.mxu0 0.0
        %508 = vmatmul.mubr.f32.gmra.mrb[0].mxu0 %v314
        %v509 = vpop.f32.mrb[0].mxu0
        %v510 = vadd.f32 %v210, %v509
        %v511 = vpop.f32.mrb[0].mxu0
        %512 = vmatprep.mubr.f32.mxu0 0.0
        %513 = vmatmul.mubr.f32.gmra.mrb[0].mxu0 %v317
        %v514 = vpop.f32.mrb[0].mxu0
        %v515 = vadd.f32 %v210, %v514
        %v516 = vpop.f32.mrb[0].mxu0
        %517 = vmatprep.mubr.f32.mxu0 0.0
        %518 = vmatmul.mubr.f32.gmra.mrb[0].mxu0 %v320
        %v519 = vpop.f32.mrb[0].mxu0
        %v520 = vadd.f32 %v210, %v519
        %v521 = vpop.f32.mrb[0].mxu0
        %522 = vmatprep.mubr.f32.mxu0 0.0
        %523 = vmatmul.mubr.f32.gmra.mrb[0].mxu0 %v323
        %v524 = vpop.f32.mrb[0].mxu0
        %v525 = vadd.f32 %v210, %v524
        %v526 = vpop.f32.mrb[0].mxu0
        %527 = vmatprep.mubr.f32.mxu0 0.0
        %528 = vmatmul.mubr.f32.gmra.mrb[0].mxu0 %v326
        %v529 = vpop.f32.mrb[0].mxu0
        %v530 = vadd.f32 %v210, %v529
        %v531 = vpop.f32.mrb[0].mxu0
        %532 = vmatprep.mubr.f32.mxu0 0.0
        %533 = vmatmul.mubr.f32.gmra.mrb[0].mxu0 %v329
        %v534 = vpop.f32.mrb[0].mxu0
        %v535 = vadd.f32 %v210, %v534
        %v536 = vpop.f32.mrb[0].mxu0
        %537 = vmatprep.mubr.f32.mxu0 0.0
        %538 = vmatmul.mubr.f32.gmra.mrb[0].mxu0 %v332
        %v539 = vpop.f32.mrb[0].mxu0
        %v540 = vadd.f32 %v210, %v539
        %v541 = vpop.f32.mrb[0].mxu0
        %542 = vmatprep.mubr.f32.mxu0 0.0
        %543 = vmatmul.mubr.f32.gmra.mrb[0].mxu0 %v335
        %v544 = vpop.f32.mrb[0].mxu0
        %v545 = vadd.f32 %v210, %v544
        %v546 = vpop.f32.mrb[0].mxu0
        %547 = vmatprep.mubr.f32.mxu0 0.0
        %548 = vmatmul.mubr.f32.gmra.mrb[0].mxu0 %v338
        %v549 = vpop.f32.mrb[0].mxu0
        %v550 = vadd.f32 %v210, %v549
        %v551 = vpop.f32.mrb[0].mxu0
        %552 = vmatprep.mubr.f32.mxu0 0.0
        %553 = vmatmul.mubr.f32.gmra.mrb[0].mxu0 %v341
        %v554 = vpop.f32.mrb[0].mxu0
        %v555 = vadd.f32 %v210, %v554
        %v556 = vpop.f32.mrb[0].mxu0
        %557 = vmatprep.mubr.f32.mxu0 0.0
        %558 = vmatmul.mubr.f32.gmra.mrb[0].mxu0 %v344
        %v559 = vpop.f32.mrb[0].mxu0
        %v560 = vadd.f32 %v210, %v559
        %v561 = vpop.f32.mrb[0].mxu0
        %562 = vmatprep.mubr.f32.mxu0 0.0
        %563 = vmatmul.mubr.f32.gmra.mrb[0].mxu0 %v347
        %v564 = vpop.f32.mrb[0].mxu0
        %v565 = vadd.f32 %v210, %v564
        %v566 = vpop.f32.mrb[0].mxu0
        %567 = vmatprep.mubr.f32.mxu0 0.0
        %568 = vmatmul.mubr.f32.gmra.mrb[0].mxu0 %v350
        %v569 = vpop.f32.mrb[0].mxu0
        %v570 = vadd.f32 %v210, %v569
        %v571 = vpop.f32.mrb[0].mxu0
        %572 = vmatprep.mubr.f32.mxu0 0.0
        %573 = vmatmul.mubr.f32.gmra.mrb[0].mxu0 %v353
        %v574 = vpop.f32.mrb[0].mxu0
        %v575 = vadd.f32 %v210, %v574
        %v576 = vpop.f32.mrb[0].mxu0
        %577 = vmatprep.mubr.f32.mxu0 0.0
        %578 = vmatmul.mubr.f32.gmra.mrb[0].mxu0 %v356
        %v579 = vpop.f32.mrb[0].mxu0
        %v580 = vadd.f32 %v210, %v579
        %v581 = vpop.f32.mrb[0].mxu0
        %582 = vmatprep.mubr.f32.mxu0 0.0
        %583 = vmatmul.mubr.f32.gmra.mrb[0].mxu0 %v359
        %v584 = vpop.f32.mrb[0].mxu0
        %v585 = vadd.f32 %v210, %v584
        %v586 = vpop.f32.mrb[0].mxu0
        %587 = vmatprep.mubr.f32.mxu0 0.0
        %588 = vmatmul.mubr.f32.gmra.mrb[0].mxu0 %v362
        %v589 = vpop.f32.mrb[0].mxu0
        %v590 = vadd.f32 %v210, %v589
        %v591 = vpop.f32.mrb[0].mxu0
        %592 = vmatprep.mubr.f32.mxu0 0.0
        %593 = vmatmul.mubr.f32.gmra.mrb[0].mxu0 %v365
        %v594 = vpop.f32.mrb[0].mxu0
        %v595 = vadd.f32 %v210, %v594
        %v596 = vpop.f32.mrb[0].mxu0
        %597 = vmatprep.mubr.f32.mxu0 0.0
        %598 = vmatmul.mubr.f32.gmra.mrb[0].mxu0 %v368
        %v599 = vpop.f32.mrb[0].mxu0
        %v600 = vadd.f32 %v210, %v599
        %v601 = vpop.f32.mrb[0].mxu0
        %602 = vmatprep.mubr.f32.mxu0 0.0
        %603 = vmatmul.mubr.f32.gmra.mrb[0].mxu0 %v371
        %v604 = vpop.f32.mrb[0].mxu0
        %v605 = vadd.f32 %v210, %v604
        %v606 = vpop.f32.mrb[0].mxu0
        %607 = vmatprep.mubr.f32.mxu0 0.0
        %608 = vmatmul.mubr.f32.gmra.mrb[0].mxu0 %v374
        %v609 = vpop.f32.mrb[0].mxu0
        %v610 = vadd.f32 %v210, %v609
        %v611 = vpop.f32.mrb[0].mxu0
        %612 = vdwg.mxu0
        %613 = vmatprep.subr.mxu0 0.0
        %614 = vmatpush1.msra.mxu0 %v455
        %615 = vmatprep.subr.mxu0 0.0
        %616 = vmatpush1.msra.mxu0 %v460
        %617 = vmatprep.subr.mxu0 0.0
        %618 = vmatpush1.msra.mxu0 %v465
        %619 = vmatprep.subr.mxu0 0.0
        %620 = vmatpush1.msra.mxu0 %v470
        %621 = vmatprep.subr.mxu0 0.0
        %622 = vmatpush1.msra.mxu0 %v475
        %623 = vmatprep.subr.mxu0 0.0
        %624 = vmatpush1.msra.mxu0 %v480
        %625 = vmatprep.subr.mxu0 0.0
        %626 = vmatpush1.msra.mxu0 %v485
        %627 = vmatprep.subr.mxu0 0.0
        %628 = vmatpush1.msra.mxu0 %v490
        %629 = vmatprep.subr.mxu0 0.0
        %630 = vmatpush1.msra.mxu0 %v495
        %631 = vmatprep.subr.mxu0 0.0
        %632 = vmatpush1.msra.mxu0 %v500
        %633 = vmatprep.subr.mxu0 0.0
        %634 = vmatpush1.msra.mxu0 %v505
        %635 = vmatprep.subr.mxu0 0.0
        %636 = vmatpush1.msra.mxu0 %v510
        %637 = vmatprep.subr.mxu0 0.0
        %638 = vmatpush1.msra.mxu0 %v515
        %639 = vmatprep.subr.mxu0 0.0
        %640 = vmatpush1.msra.mxu0 %v520
        %641 = vmatprep.subr.mxu0 0.0
        %642 = vmatpush1.msra.mxu0 %v525
        %643 = vmatprep.subr.mxu0 0.0
        %644 = vmatpush1.msra.mxu0 %v530
        %645 = vmatprep.subr.mxu0 0.0
        %646 = vmatpush1.msra.mxu0 %v535
        %647 = vmatprep.subr.mxu0 0.0
        %648 = vmatpush1.msra.mxu0 %v540
        %649 = vmatprep.subr.mxu0 0.0
        %650 = vmatpush1.msra.mxu0 %v545
        %651 = vmatprep.subr.mxu0 0.0
        %652 = vmatpush1.msra.mxu0 %v550
        %653 = vmatprep.subr.mxu0 0.0
        %654 = vmatpush1.msra.mxu0 %v555
        %655 = vmatprep.subr.mxu0 0.0
        %656 = vmatpush1.msra.mxu0 %v560
        %657 = vmatprep.subr.mxu0 0.0
        %658 = vmatpush1.msra.mxu0 %v565
        %659 = vmatprep.subr.mxu0 0.0
        %660 = vmatpush1.msra.mxu0 %v570
        %661 = vmatprep.subr.mxu0 0.0
        %662 = vmatpush1.msra.mxu0 %v575
        %663 = vmatprep.subr.mxu0 0.0
        %664 = vmatpush1.msra.mxu0 %v580
        %665 = vmatprep.subr.mxu0 0.0
        %666 = vmatpush1.msra.mxu0 %v585
        %667 = vmatprep.subr.mxu0 0.0
        %668 = vmatpush1.msra.mxu0 %v590
        %669 = vmatprep.subr.mxu0 0.0
        %670 = vmatpush1.msra.mxu0 %v595
        %671 = vmatprep.subr.mxu0 0.0
        %672 = vmatpush1.msra.mxu0 %v600
        %673 = vmatprep.subr.mxu0 0.0
        %674 = vmatpush1.msra.mxu0 %v605
        %675 = vmatprep.subr.mxu0 0.0
        %676 = vmatpush1.msra.mxu0 %v610
        %677 = vmatprep.mubr.f32.mxu0 1.0
        %678 = vmatmul.mubr.f32.gmra.mrb[0].mxu0 1.0
        %v679 = vpop.f32.mrb[0].mxu0
        %v680 = vadd.f32 0.0, %v679
        %v681 = vpop.f32.mrb[0].mxu0
        %682 = vdwg.mxu0
        %v683 = vmul.f32 %v455, %v455
        %v684 = vmul.f32 %v460, %v460
        %v685 = vmul.f32 %v465, %v465
        %v686 = vmul.f32 %v470, %v470
        %v687 = vmul.f32 %v475, %v475
        %v688 = vmul.f32 %v480, %v480
        %v689 = vmul.f32 %v485, %v485
        %v690 = vmul.f32 %v490, %v490
        %v691 = vmul.f32 %v495, %v495
        %v692 = vmul.f32 %v500, %v500
        %v693 = vmul.f32 %v505, %v505
        %v694 = vmul.f32 %v510, %v510
        %v695 = vmul.f32 %v515, %v515
        %v696 = vmul.f32 %v520, %v520
        %v697 = vmul.f32 %v525, %v525
        %v698 = vmul.f32 %v530, %v530
        %v699 = vmul.f32 %v535, %v535
        %v700 = vmul.f32 %v540, %v540
        %v701 = vmul.f32 %v545, %v545
        %v702 = vmul.f32 %v550, %v550
        %v703 = vmul.f32 %v555, %v555
        %v704 = vmul.f32 %v560, %v560
        %v705 = vmul.f32 %v565, %v565
        %v706 = vmul.f32 %v570, %v570
        %v707 = vmul.f32 %v575, %v575
        %v708 = vmul.f32 %v580, %v580
        %v709 = vmul.f32 %v585, %v585
        %v710 = vmul.f32 %v590, %v590
        %v711 = vmul.f32 %v595, %v595
        %v712 = vmul.f32 %v600, %v600
        %v713 = vmul.f32 %v605, %v605
        %v714 = vmul.f32 %v610, %v610
        %715 = vmatprep.subr.mxu0 0.0
        %716 = vmatpush1.msra.mxu0 %v683
        %717 = vmatprep.subr.mxu0 0.0
        %718 = vmatpush1.msra.mxu0 %v684
        %719 = vmatprep.subr.mxu0 0.0
        %720 = vmatpush1.msra.mxu0 %v685
        %721 = vmatprep.subr.mxu0 0.0
        %722 = vmatpush1.msra.mxu0 %v686
        %723 = vmatprep.subr.mxu0 0.0
        %724 = vmatpush1.msra.mxu0 %v687
        %725 = vmatprep.subr.mxu0 0.0
        %726 = vmatpush1.msra.mxu0 %v688
        %727 = vmatprep.subr.mxu0 0.0
        %728 = vmatpush1.msra.mxu0 %v689
        %729 = vmatprep.subr.mxu0 0.0
        %730 = vmatpush1.msra.mxu0 %v690
        %731 = vmatprep.subr.mxu0 0.0
        %732 = vmatpush1.msra.mxu0 %v691
        %733 = vmatprep.subr.mxu0 0.0
        %734 = vmatpush1.msra.mxu0 %v692
        %735 = vmatprep.subr.mxu0 0.0
        %736 = vmatpush1.msra.mxu0 %v693
        %737 = vmatprep.subr.mxu0 0.0
        %738 = vmatpush1.msra.mxu0 %v694
        %739 = vmatprep.subr.mxu0 0.0
        %740 = vmatpush1.msra.mxu0 %v695
        %741 = vmatprep.subr.mxu0 0.0
        %742 = vmatpush1.msra.mxu0 %v696
        %743 = vmatprep.subr.mxu0 0.0
        %744 = vmatpush1.msra.mxu0 %v697
        %745 = vmatprep.subr.mxu0 0.0
        %746 = vmatpush1.msra.mxu0 %v698
        %747 = vmatprep.subr.mxu0 0.0
        %748 = vmatpush1.msra.mxu0 %v699
        %749 = vmatprep.subr.mxu0 0.0
        %750 = vmatpush1.msra.mxu0 %v700
        %751 = vmatprep.subr.mxu0 0.0
        %752 = vmatpush1.msra.mxu0 %v701
        %753 = vmatprep.subr.mxu0 0.0
        %754 = vmatpush1.msra.mxu0 %v702
        %755 = vmatprep.subr.mxu0 0.0
        %756 = vmatpush1.msra.mxu0 %v703
        %757 = vmatprep.subr.mxu0 0.0
        %758 = vmatpush1.msra.mxu0 %v704
        %759 = vmatprep.subr.mxu0 0.0
        %760 = vmatpush1.msra.mxu0 %v705
        %761 = vmatprep.subr.mxu0 0.0
        %762 = vmatpush1.msra.mxu0 %v706
        %763 = vmatprep.subr.mxu0 0.0
        %764 = vmatpush1.msra.mxu0 %v707
        %765 = vmatprep.subr.mxu0 0.0
        %766 = vmatpush1.msra.mxu0 %v708
        %767 = vmatprep.subr.mxu0 0.0
        %768 = vmatpush1.msra.mxu0 %v709
        %769 = vmatprep.subr.mxu0 0.0
        %770 = vmatpush1.msra.mxu0 %v710
        %771 = vmatprep.subr.mxu0 0.0
        %772 = vmatpush1.msra.mxu0 %v711
        %773 = vmatprep.subr.mxu0 0.0
        %774 = vmatpush1.msra.mxu0 %v712
        %775 = vmatprep.subr.mxu0 0.0
        %776 = vmatpush1.msra.mxu0 %v713
        %777 = vmatprep.subr.mxu0 0.0
        %778 = vmatpush1.msra.mxu0 %v714
        %779 = vmatprep.mubr.f32.mxu0 1.0
        %780 = vmatmul.mubr.f32.gmra.mrb[0].mxu0 1.0
        %v781 = vpop.f32.mrb[0].mxu0
        %v782 = vadd.f32 0.0, %v781
        %v783 = vpop.f32.mrb[0].mxu0
        %784 = vdwg.mxu0
        %v786 = vrot.slane %v782, 7
        %vm788 = vcmask 1040384
        %v789 = vsel %vm788, %v680, %v786
        %vm790 = vcmask 254976
        %791 = vst.msk [vmem:[%s188] sm:$0x3] %vm790, %v789
        %s792 = sand.u32 %s109, 1
        %s793 = scalar_lea.sflag [#allocation3], %s792
        %s794 = sand.u32 %s109, 1
        %s795 = smul.addr %s794, 2
        %s796 = scalar_lea.vmem [#allocation2], %s795
        // Predicated region
        $region33: #{tpu_custom_call.1} parent=31 // pred_check
          %p797 = pneg %p119
        $region34: #{tpu_custom_call.1} parent=31 // pred_check_branch
          %799 = sbr.rel (%p797) target = $region36
        $region35: #{tpu_custom_call.1} parent=31 // pred_region
          %s800 = sadd.s32 %s21, %s22
          %s802 = ssub.s32 32, 32
          %803 = vsyncadd %s793, %s802
          %s804 = smul.addr %s800, 32
          %s805 = scalar_lea.hbm %s3, %s804
          %s807 = sshll.u32 %s796, 4
          %s808 = int_to_ptr.vmem [resolvable:$true] %s807
          %810 = dma.vmem_to_hbm [thread:$0]  %s808, 32, %s805, %s793
        $region36: #{tpu_custom_call.1} parent=31 // pred_fallthru
          _
      $region32: #{tpu_custom_call.1} parent=5 // pred_fallthru
        _
      %p811 = scmp.le.s32.totalorder 2, %s12
      // Predicated region
      $region37: #{tpu_custom_call.1} parent=5 // pred_check
        %p812 = pneg %p811
      $region38: #{tpu_custom_call.1} parent=5 // pred_check_branch
        %814 = sbr.rel (%p812) target = $region40
      $region39: #{tpu_custom_call.1} parent=5 // pred_region
        %s815 = ssub.s32 %s12, 2
        // Predicated region
        $region41: #{tpu_custom_call.1} parent=39 // pred_check
          %p816 = pneg %p125
        $region42: #{tpu_custom_call.1} parent=39 // pred_check_branch
          %818 = sbr.rel (%p816) target = $region44
        $region43: #{tpu_custom_call.1} parent=39 // pred_region
          %s819 = sand.u32 %s110, 1
          %s820 = scalar_lea.sflag [#allocation3], %s819
          %s821 = sand.u32 %s110, 1
          %s822 = smul.addr %s821, 2
          %s823 = scalar_lea.vmem [#allocation2], %s822
          %824 = dma.done %s820, 32
        $region44: #{tpu_custom_call.1} parent=39 // pred_fallthru
          _
      $region40: #{tpu_custom_call.1} parent=5 // pred_fallthru
        _
    $region6: #{tpu_custom_call.1} parent=1 // loop_footer
      %s16 = sadd.s32 1, %s12
    $region7: #{tpu_custom_call.1} parent=1 // loop_footer_branch
      %11 = sbr.rel target = $region3
    $region8: #{tpu_custom_call.1} parent=1 // loop_exit
      _
    %825 = vsyncpa [#allocation3], 1
    %s826 = scalar_lea.sflag [#allocation3], 1
    %827 = vsyncpa %s826, 1

</llo_original>
